<compile_context>
chip_gen: v7x
topology: tpu7x:2x2x1
jax: 0.10.0
libtpu: 0.0.40
codegen_flags: <defaults>
</compile_context>

<pallas_src>
import jax
import jax.numpy as jnp
from jax.experimental import pallas as pl
from jax.experimental.pallas import tpu as pltpu


IN_FEATURES = 128 * 2 * 2   # 512
HIDDEN = 20                 # per-head hidden width
HPAD = 128                  # fused, lane-padded hidden width: policy @ [0:20], value @ [20:40]
DEFAULT_TB = 2048           # batch tile rows: bf16 x-tile = TB*512*2 B = 2 MiB (x2 buffers)


def _round_up(n, m):
    return ((n + m - 1) // m) * m


def _policy_value_kernel(x_ref, w1_ref, b1_ref, w2_ref, b2_ref, probs_ref, value_ref):
    # x_ref:  (TB, 512)  bf16
    # w1_ref: (512, 128) bf16  -- [policy_lin1^T | value_lin1^T | zero pad]
    # b1_ref: (1, 128)   f32
    # w2_ref: (3, 128)   f32   -- rows: policy logit 0, policy logit 1, value (zero padded)
    # b2_ref: (1, 3)     f32   -- [bp2[0], bp2[1], bv2[0]]
    # probs_ref: (TB, 2) f32;  value_ref: (TB, 1) f32

    # Single MXU pass computes both heads' hidden layers; result is a lane-dense (TB, 128).
    h = jnp.dot(x_ref[...], w1_ref[...], preferred_element_type=jnp.float32)
    h = jnp.maximum(h + b1_ref[...], 0.0)          # fused bias + ReLU on the VPU

    # Second layers: VPU multiply + lane reduction (zero-padded rows keep exact semantics).
    w2 = w2_ref[...]
    b2 = b2_ref[...]
    l0 = jnp.sum(h * w2[0:1, :], axis=-1, keepdims=True) + b2[:, 0:1]   # policy logit 0
    l1 = jnp.sum(h * w2[1:2, :], axis=-1, keepdims=True) + b2[:, 1:2]   # policy logit 1
    v = jnp.sum(h * w2[2:3, :], axis=-1, keepdims=True) + b2[:, 2:3]    # state value

    # Numerically-stable softmax over the two policy logits.
    m = jnp.maximum(l0, l1)
    e0 = jnp.exp(l0 - m)
    e1 = jnp.exp(l1 - m)
    inv = 1.0 / (e0 + e1)
    probs_ref[...] = jnp.concatenate([e0 * inv, e1 * inv], axis=-1).astype(probs_ref.dtype)
    value_ref[...] = v.astype(value_ref.dtype)


def _pack_params(params):
    """Fuse + zero-pad the four nn.Linear layers into lane-dense kernel operands."""
    wp1, bp1, wp2, bp2, wv1, bv1, wv2, bv2 = params

    w1c = jnp.zeros((IN_FEATURES, HPAD), jnp.float32)
    w1c = w1c.at[:, 0:HIDDEN].set(wp1.T.astype(jnp.float32))
    w1c = w1c.at[:, HIDDEN:2 * HIDDEN].set(wv1.T.astype(jnp.float32))

    b1c = jnp.zeros((1, HPAD), jnp.float32)
    b1c = b1c.at[0, 0:HIDDEN].set(bp1.astype(jnp.float32))
    b1c = b1c.at[0, HIDDEN:2 * HIDDEN].set(bv1.astype(jnp.float32))

    w2c = jnp.zeros((3, HPAD), jnp.float32)
    w2c = w2c.at[0, 0:HIDDEN].set(wp2[0].astype(jnp.float32))
    w2c = w2c.at[1, 0:HIDDEN].set(wp2[1].astype(jnp.float32))
    w2c = w2c.at[2, HIDDEN:2 * HIDDEN].set(wv2[0].astype(jnp.float32))

    b2c = jnp.concatenate([bp2, bv2]).reshape(1, 3).astype(jnp.float32)
    return w1c.astype(jnp.bfloat16), b1c, w2c, b2c


def partial_policy_forward(x, params, critic=False, tile_rows=DEFAULT_TB):
    """x: (..., 128, 2, 2). Returns action_prob (..., 2), and state_value (..., 1) if critic."""
    lead = x.shape[:-3]
    x2d = x.reshape((-1, IN_FEATURES))
    B = x2d.shape[0]

    # Batch tile: multiple of 8 sublanes, capped at tile_rows; pad B up to a tile multiple
    # (padded rows compute harmless values that are sliced off below).
    tb = min(tile_rows, max(8, _round_up(B, 8)))
    b_pad = _round_up(B, tb)

    x2d = x2d.astype(jnp.bfloat16)          # bf16 streaming: halves HBM read traffic
    if b_pad != B:
        x2d = jnp.pad(x2d, ((0, b_pad - B), (0, 0)))

    w1c, b1c, w2c, b2c = _pack_params(params)

    probs, value = pl.pallas_call(
        _policy_value_kernel,
        out_shape=(jax.ShapeDtypeStruct((b_pad, 2), jnp.float32),
                   jax.ShapeDtypeStruct((b_pad, 1), jnp.float32)),
        grid=(pl.cdiv(b_pad, tb),),
        in_specs=[
            pl.BlockSpec((tb, IN_FEATURES), lambda i: (i, 0)),   # streamed batch tile
            pl.BlockSpec((IN_FEATURES, HPAD), lambda i: (0, 0)),  # resident fused W1
            pl.BlockSpec((1, HPAD), lambda i: (0, 0)),
            pl.BlockSpec((3, HPAD), lambda i: (0, 0)),
            pl.BlockSpec((1, 3), lambda i: (0, 0)),
        ],
        out_specs=(
            pl.BlockSpec((tb, 2), lambda i: (i, 0)),
            pl.BlockSpec((tb, 1), lambda i: (i, 0)),
        ),
        compiler_params=pltpu.CompilerParams(
            # Independent batch tiles -> shard across v7x's two TensorCores.
            dimension_semantics=("parallel",)),
    )(x2d, w1c, b1c, w2c, b2c)

    probs = probs[:B].reshape(lead + (2,))
    value = value[:B].reshape(lead + (1,))
    if critic:
        return probs, value
    return probs


def init_params(key):
    """nn.Linear-default init: U(-1/sqrt(fan_in), +1/sqrt(fan_in)) for weights and biases."""
    ks = jax.random.split(key, 8)

    def linear(kw, kb, fan_in, fan_out):
        bound = 1.0 / jnp.sqrt(jnp.float32(fan_in))
        w = jax.random.uniform(kw, (fan_out, fan_in), jnp.float32, -bound, bound)
        b = jax.random.uniform(kb, (fan_out,), jnp.float32, -bound, bound)
        return w, b

    wp1, bp1 = linear(ks[0], ks[1], IN_FEATURES, HIDDEN)   # policy_lin1
    wp2, bp2 = linear(ks[2], ks[3], HIDDEN, 2)             # policy_lin2
    wv1, bv1 = linear(ks[4], ks[5], IN_FEATURES, HIDDEN)   # value_lin1
    wv2, bv2 = linear(ks[6], ks[7], HIDDEN, 1)             # value_lin2
    return (wp1, bp1, wp2, bp2, wv1, bv1, wv2, bv2)


if __name__ == "__main__":
    key = jax.random.PRNGKey(0)
    kx, kp = jax.random.split(key)

    # Small example input consistent with the module: batch=2, NCHW = (2, 128, 2, 2).
    x = jax.random.normal(kx, (2, 128, 2, 2), jnp.float32)
    params = init_params(kp)

    probs, value = partial_policy_forward(x, params, critic=True)
    probs, value = jax.block_until_ready((probs, value))

    # Pure-JAX reference (inputs cast through bf16 to match the kernel's streaming dtype;
    # accumulation is f32 in both paths).
    wp1, bp1, wp2, bp2, wv1, bv1, wv2, bv2 = params
    xf = x.reshape(2, -1).astype(jnp.bfloat16).astype(jnp.float32)
    wp1f = wp1.astype(jnp.bfloat16).astype(jnp.float32)
    wv1f = wv1.astype(jnp.bfloat16).astype(jnp.float32)
    hp = jnp.maximum(xf @ wp1f.T + bp1, 0.0)
    ref_probs = jax.nn.softmax(hp @ wp2.T + bp2, axis=-1)
    hv = jnp.maximum(xf @ wv1f.T + bv1, 0.0)
    ref_value = hv @ wv2.T + bv2

    assert probs.shape == (2, 2) and value.shape == (2, 1), (probs.shape, value.shape)
    assert jnp.allclose(probs, ref_probs, atol=1e-3, rtol=1e-3), (probs, ref_probs)
    assert jnp.allclose(value, ref_value, atol=1e-3, rtol=1e-3), (value, ref_value)
    assert jnp.allclose(jnp.sum(probs, axis=-1), 1.0, atol=1e-5)

    print("KERNEL_OK")
</pallas_src>

<mosaic_0001>
module attributes {stable_mosaic.version = 11 : i64} {
  func.func @_policy_value_kernel(%arg0: i32, %arg1: memref<8x512xbf16, #tpu.memory_space<vmem>>, %arg2: memref<512x128xbf16, #tpu.memory_space<vmem>>, %arg3: memref<1x128xf32, #tpu.memory_space<vmem>>, %arg4: memref<3x128xf32, #tpu.memory_space<vmem>>, %arg5: memref<1x3xf32, #tpu.memory_space<vmem>>, %arg6: memref<8x2xf32, #tpu.memory_space<vmem>>, %arg7: memref<8x1xf32, #tpu.memory_space<vmem>>) attributes {dimension_semantics = [#tpu.dimension_semantics<parallel>], iteration_bounds = array<i64: 1>, scalar_prefetch = 0 : i64, scratch_operands = 0 : i64, tpu.core_type = #tpu.core_type<tc>, window_params = [{transform_indices = @transform_0, window_bounds = array<i64: 8, 512>}, {pipeline_mode = #tpu.pipeline_mode<synchronous>, transform_indices = @transform_1, window_bounds = array<i64: 512, 128>}, {pipeline_mode = #tpu.pipeline_mode<synchronous>, transform_indices = @transform_2, window_bounds = array<i64: 1, 128>}, {pipeline_mode = #tpu.pipeline_mode<synchronous>, transform_indices = @transform_3, window_bounds = array<i64: 3, 128>}, {pipeline_mode = #tpu.pipeline_mode<synchronous>, transform_indices = @transform_4, window_bounds = array<i64: 1, 3>}, {transform_indices = @transform_5, window_bounds = array<i64: 8, 2>}, {transform_indices = @transform_6, window_bounds = array<i64: 8, 1>}]} {
    %c0 = arith.constant 0 : index
    %c0_0 = arith.constant 0 : index
    %0 = vector.load %arg1[%c0, %c0_0] : memref<8x512xbf16, #tpu.memory_space<vmem>>, vector<8x512xbf16>
    %c0_1 = arith.constant 0 : index
    %c0_2 = arith.constant 0 : index
    %1 = vector.load %arg2[%c0_1, %c0_2] : memref<512x128xbf16, #tpu.memory_space<vmem>>, vector<512x128xbf16>
    %cst = arith.constant dense<0.000000e+00> : vector<8x128xf32>
    %2 = tpu.matmul %0, %1, %cst {dimension_numbers = #tpu.dot_dimension_numbers<[1], [0], [0], [1], [0, 0, 1, 1], [], []>} : vector<8x512xbf16>, vector<512x128xbf16>, vector<8x128xf32> -> vector<8x128xf32>
    %c0_3 = arith.constant 0 : index
    %c0_4 = arith.constant 0 : index
    %3 = vector.load %arg3[%c0_3, %c0_4] : memref<1x128xf32, #tpu.memory_space<vmem>>, vector<1x128xf32>
    %4 = vector.broadcast %3 : vector<1x128xf32> to vector<8x128xf32>
    %5 = arith.addf %2, %4 : vector<8x128xf32>
    %cst_5 = arith.constant 0.000000e+00 : f32
    %6 = vector.broadcast %cst_5 : f32 to vector<8x128xf32>
    %7 = arith.maximumf %5, %6 : vector<8x128xf32>
    %c0_6 = arith.constant 0 : index
    %c0_7 = arith.constant 0 : index
    %8 = vector.load %arg4[%c0_6, %c0_7] : memref<3x128xf32, #tpu.memory_space<vmem>>, vector<3x128xf32>
    %c0_8 = arith.constant 0 : index
    %c0_9 = arith.constant 0 : index
    %9 = vector.load %arg5[%c0_8, %c0_9] : memref<1x3xf32, #tpu.memory_space<vmem>>, vector<1x3xf32>
    %10 = vector.extract_strided_slice %8 {offsets = [0, 0], sizes = [1, 128], strides = [1, 1]} : vector<3x128xf32> to vector<1x128xf32>
    %11 = vector.broadcast %10 : vector<1x128xf32> to vector<8x128xf32>
    %12 = arith.mulf %7, %11 : vector<8x128xf32>
    %cst_10 = arith.constant dense<0.000000e+00> : vector<8xf32>
    %13 = vector.multi_reduction <add>, %12, %cst_10 [1] : vector<8x128xf32> to vector<8xf32>
    %14 = vector.shape_cast %13 : vector<8xf32> to vector<8x1xf32>
    %15 = vector.extract_strided_slice %9 {offsets = [0, 0], sizes = [1, 1], strides = [1, 1]} : vector<1x3xf32> to vector<1x1xf32>
    %16 = vector.broadcast %15 : vector<1x1xf32> to vector<8x1xf32>
    %17 = arith.addf %14, %16 : vector<8x1xf32>
    %18 = vector.extract_strided_slice %8 {offsets = [1, 0], sizes = [1, 128], strides = [1, 1]} : vector<3x128xf32> to vector<1x128xf32>
    %19 = vector.broadcast %18 : vector<1x128xf32> to vector<8x128xf32>
    %20 = arith.mulf %7, %19 : vector<8x128xf32>
    %cst_11 = arith.constant dense<0.000000e+00> : vector<8xf32>
    %21 = vector.multi_reduction <add>, %20, %cst_11 [1] : vector<8x128xf32> to vector<8xf32>
    %22 = vector.shape_cast %21 : vector<8xf32> to vector<8x1xf32>
    %23 = vector.extract_strided_slice %9 {offsets = [0, 1], sizes = [1, 1], strides = [1, 1]} : vector<1x3xf32> to vector<1x1xf32>
    %24 = vector.broadcast %23 : vector<1x1xf32> to vector<8x1xf32>
    %25 = arith.addf %22, %24 : vector<8x1xf32>
    %26 = vector.extract_strided_slice %8 {offsets = [2, 0], sizes = [1, 128], strides = [1, 1]} : vector<3x128xf32> to vector<1x128xf32>
    %27 = vector.broadcast %26 : vector<1x128xf32> to vector<8x128xf32>
    %28 = arith.mulf %7, %27 : vector<8x128xf32>
    %cst_12 = arith.constant dense<0.000000e+00> : vector<8xf32>
    %29 = vector.multi_reduction <add>, %28, %cst_12 [1] : vector<8x128xf32> to vector<8xf32>
    %30 = vector.shape_cast %29 : vector<8xf32> to vector<8x1xf32>
    %31 = vector.extract_strided_slice %9 {offsets = [0, 2], sizes = [1, 1], strides = [1, 1]} : vector<1x3xf32> to vector<1x1xf32>
    %32 = vector.broadcast %31 : vector<1x1xf32> to vector<8x1xf32>
    %33 = arith.addf %30, %32 : vector<8x1xf32>
    %34 = arith.maximumf %17, %25 : vector<8x1xf32>
    %35 = arith.subf %17, %34 : vector<8x1xf32>
    %36 = math.exp %35 : vector<8x1xf32>
    %37 = arith.subf %25, %34 : vector<8x1xf32>
    %38 = math.exp %37 : vector<8x1xf32>
    %39 = arith.addf %36, %38 : vector<8x1xf32>
    %cst_13 = arith.constant 1.000000e+00 : f32
    %40 = vector.broadcast %cst_13 : f32 to vector<8x1xf32>
    %41 = arith.divf %40, %39 : vector<8x1xf32>
    %42 = arith.mulf %36, %41 : vector<8x1xf32>
    %43 = arith.mulf %38, %41 : vector<8x1xf32>
    %44 = tpu.concatenate %42, %43 in 1 : vector<8x1xf32>, vector<8x1xf32> -> vector<8x2xf32>
    %c0_14 = arith.constant 0 : index
    %c0_15 = arith.constant 0 : index
    %45 = vector.load %arg6[%c0_14, %c0_15] : memref<8x2xf32, #tpu.memory_space<vmem>>, vector<8x2xf32>
    tpu.vector_store %arg6[%c0_14, %c0_15], %44 {strides = array<i32>} : memref<8x2xf32, #tpu.memory_space<vmem>>, vector<8x2xf32>,
    %c0_16 = arith.constant 0 : index
    %c0_17 = arith.constant 0 : index
    %46 = vector.load %arg7[%c0_16, %c0_17] : memref<8x1xf32, #tpu.memory_space<vmem>>, vector<8x1xf32>
    tpu.vector_store %arg7[%c0_16, %c0_17], %33 {strides = array<i32>} : memref<8x1xf32, #tpu.memory_space<vmem>>, vector<8x1xf32>,
    return
  }
  func.func @transform_0(%arg0: i32) -> (i32, i32) {
    %c0_i32 = arith.constant 0 : i32
    %c0_i32_0 = arith.constant 0 : i32
    return %arg0, %c0_i32 : i32, i32
  }
  func.func @transform_1(%arg0: i32) -> (i32, i32) {
    %c0_i32 = arith.constant 0 : i32
    %c0_i32_0 = arith.constant 0 : i32
    %c0_i32_1 = arith.constant 0 : i32
    return %c0_i32, %c0_i32_0 : i32, i32
  }
  func.func @transform_2(%arg0: i32) -> (i32, i32) {
    %c0_i32 = arith.constant 0 : i32
    %c0_i32_0 = arith.constant 0 : i32
    %c0_i32_1 = arith.constant 0 : i32
    return %c0_i32, %c0_i32_0 : i32, i32
  }
  func.func @transform_3(%arg0: i32) -> (i32, i32) {
    %c0_i32 = arith.constant 0 : i32
    %c0_i32_0 = arith.constant 0 : i32
    %c0_i32_1 = arith.constant 0 : i32
    return %c0_i32, %c0_i32_0 : i32, i32
  }
  func.func @transform_4(%arg0: i32) -> (i32, i32) {
    %c0_i32 = arith.constant 0 : i32
    %c0_i32_0 = arith.constant 0 : i32
    %c0_i32_1 = arith.constant 0 : i32
    return %c0_i32, %c0_i32_0 : i32, i32
  }
  func.func @transform_5(%arg0: i32) -> (i32, i32) {
    %c0_i32 = arith.constant 0 : i32
    %c0_i32_0 = arith.constant 0 : i32
    return %arg0, %c0_i32 : i32, i32
  }
  func.func @transform_6(%arg0: i32) -> (i32, i32) {
    %c0_i32 = arith.constant 0 : i32
    %c0_i32_0 = arith.constant 0 : i32
    return %arg0, %c0_i32 : i32, i32
  }
}

</mosaic_0001>

<llo_original>
// kernel: tpu_custom_call.1
$region0: #{tpu_custom_call.1}
  #allocation0 [shape = 'u32[]', space=smem, size = 0x4, offset = 0x4, fixed_abs, tag = 'smem constant byte address 0x4 - core index']
  #allocation1 [shape = 'u32[144,128]{1,0:T(1,128)}', space=vmem, size = 0x12000, scoped, tag = 'internal scratch']
  %s0 = inlined_call_operand.hbm [shape: bf16[8,512], index: 0, kind: input, shape index: {}]
  %s1 = inlined_call_operand.hbm [shape: bf16[512,128], index: 1, kind: input, shape index: {}]
  %s2 = inlined_call_operand.vmem [shape: f32[1,128], index: 2, kind: input, shape index: {}]
  %s3 = inlined_call_operand.vmem [shape: f32[3,128], index: 3, kind: input, shape index: {}]
  %s4 = inlined_call_operand.vmem [shape: f32[1,3], index: 4, kind: input, shape index: {}]
  %s5 = inlined_call_operand.vmem [shape: f32[8,2], index: 5, kind: output, shape index: {0}]
  %s6 = inlined_call_operand.vmem [shape: f32[8,1], index: 6, kind: output, shape index: {1}]
  %7 = xla_tuple %s5, %s6
  %s8 = sld [smem:[#allocation0]]
  $region46: #{tpu_custom_call.1} parent=0
    _
  %s10 = ssub.s32 1, %s8
  %s11 = scalar_select 0, %s10, %s8
  $region1: #{tpu_custom_call.1} parent=0
    #allocation2 [shape = 'u8[8192]{0}', space=vmem, size = 0x2000, scoped, tag = 'input window, operand 0, single buffered']
    #allocation3 [shape = 's32[1]{0}', space=sflag, size = 0x4, scoped, tag = 'scoped memory for tpu_custom_call.1']
    #allocation4 [shape = 'u8[131072]{0}', space=vmem, size = 0x20000, scoped, tag = 'input window, operand 1, single buffered']
    #allocation5 [shape = 's32[1]{0}', space=sflag, size = 0x4, scoped, tag = 'scoped memory for tpu_custom_call.1']
    %12 = vsyncpa [#allocation3], 0
    %13 = vsyncpa [#allocation5], 0
    // Predicated region
    $region2: #{tpu_custom_call.1} parent=1 // pred_check
      _
    $region3: #{tpu_custom_call.1} parent=1 // pred_check_branch
      %15 = sbr.rel (0) target = $region5
    $region4: #{tpu_custom_call.1} parent=1 // pred_region
      %s17 = ssub.s32 256, 256
      %18 = vsyncadd [#allocation3], %s17
      %s20 = sshll.u32 [#allocation2], 4
      %s21 = int_to_ptr.vmem [resolvable:$true] %s20
      %23 = dma.hbm_to_vmem [thread:$0]  %s0, 256, %s21, [#allocation3]
    $region5: #{tpu_custom_call.1} parent=1 // pred_fallthru
      _
    // Predicated region
    $region6: #{tpu_custom_call.1} parent=1 // pred_check
      _
    $region7: #{tpu_custom_call.1} parent=1 // pred_check_branch
      %25 = sbr.rel (0) target = $region9
    $region8: #{tpu_custom_call.1} parent=1 // pred_region
      %s27 = ssub.s32 4096, 4096
      %28 = vsyncadd [#allocation5], %s27
      %s29 = sshll.u32 [#allocation4], 4
      %s30 = int_to_ptr.vmem [resolvable:$true] %s29
      %35 = dma.hbm_to_vmem [thread:$0]  %s1, 4096, %s30, [#allocation5], 64, 64, 4
    $region9: #{tpu_custom_call.1} parent=1 // pred_fallthru
      _
    // Predicated region
    $region10: #{tpu_custom_call.1} parent=1 // pred_check
      _
    $region11: #{tpu_custom_call.1} parent=1 // pred_check_branch
      %37 = sbr.rel (0) target = $region13
    $region12: #{tpu_custom_call.1} parent=1 // pred_region
      _
    $region13: #{tpu_custom_call.1} parent=1 // pred_fallthru
      _
    // Predicated region
    $region14: #{tpu_custom_call.1} parent=1 // pred_check
      _
    $region15: #{tpu_custom_call.1} parent=1 // pred_check_branch
      %39 = sbr.rel (0) target = $region17
    $region16: #{tpu_custom_call.1} parent=1 // pred_region
      _
    $region17: #{tpu_custom_call.1} parent=1 // pred_fallthru
      _
    // Predicated region
    $region18: #{tpu_custom_call.1} parent=1 // pred_check
      _
    $region19: #{tpu_custom_call.1} parent=1 // pred_check_branch
      %41 = sbr.rel (0) target = $region21
    $region20: #{tpu_custom_call.1} parent=1 // pred_region
      _
    $region21: #{tpu_custom_call.1} parent=1 // pred_fallthru
      _
    // Predicated region
    $region22: #{tpu_custom_call.1} parent=1 // pred_check
      _
    $region23: #{tpu_custom_call.1} parent=1 // pred_check_branch
      %43 = sbr.rel (0) target = $region25
    $region24: #{tpu_custom_call.1} parent=1 // pred_region
      %44 = dma.done [#allocation3], 256
    $region25: #{tpu_custom_call.1} parent=1 // pred_fallthru
      _
    // Predicated region
    $region26: #{tpu_custom_call.1} parent=1 // pred_check
      _
    $region27: #{tpu_custom_call.1} parent=1 // pred_check_branch
      %46 = sbr.rel (0) target = $region29
    $region28: #{tpu_custom_call.1} parent=1 // pred_region
      %47 = dma.done [#allocation5], 4096
    $region29: #{tpu_custom_call.1} parent=1 // pred_fallthru
      _
    %v49 = vld [vmem:[#allocation2] sm:$0xff]
    %v50 = vld [vmem:[#allocation2 + $0x8] sm:$0xff]
    %v51 = vld [vmem:[#allocation4] sm:$0xf]
    %v52 = vld [vmem:[#allocation4 + $0x4] sm:$0xf]
    %v53 = vld [vmem:[#allocation4 + $0x8] sm:$0xf]
    %v54 = vld [vmem:[#allocation4 + $0xc] sm:$0xf]
    %v55 = vld [vmem:[#allocation4 + $0x10] sm:$0xf]
    %v56 = vld [vmem:[#allocation4 + $0x14] sm:$0xf]
    %v57 = vld [vmem:[#allocation4 + $0x18] sm:$0xf]
    %v58 = vld [vmem:[#allocation4 + $0x1c] sm:$0xf]
    %v59 = vld [vmem:[#allocation4 + $0x20] sm:$0xf]
    %v60 = vld [vmem:[#allocation4 + $0x24] sm:$0xf]
    %v61 = vld [vmem:[#allocation4 + $0x28] sm:$0xf]
    %v62 = vld [vmem:[#allocation4 + $0x2c] sm:$0xf]
    %v63 = vld [vmem:[#allocation4 + $0x30] sm:$0xf]
    %v64 = vld [vmem:[#allocation4 + $0x34] sm:$0xf]
    %v65 = vld [vmem:[#allocation4 + $0x38] sm:$0xf]
    %v66 = vld [vmem:[#allocation4 + $0x3c] sm:$0xf]
    %v67 = vld [vmem:[#allocation4 + $0x40] sm:$0xf]
    %v68 = vld [vmem:[#allocation4 + $0x44] sm:$0xf]
    %v69 = vld [vmem:[#allocation4 + $0x48] sm:$0xf]
    %v70 = vld [vmem:[#allocation4 + $0x4c] sm:$0xf]
    %v71 = vld [vmem:[#allocation4 + $0x50] sm:$0xf]
    %v72 = vld [vmem:[#allocation4 + $0x54] sm:$0xf]
    %v73 = vld [vmem:[#allocation4 + $0x58] sm:$0xf]
    %v74 = vld [vmem:[#allocation4 + $0x5c] sm:$0xf]
    %v75 = vld [vmem:[#allocation4 + $0x60] sm:$0xf]
    %v76 = vld [vmem:[#allocation4 + $0x64] sm:$0xf]
    %v77 = vld [vmem:[#allocation4 + $0x68] sm:$0xf]
    %v78 = vld [vmem:[#allocation4 + $0x6c] sm:$0xf]
    %v79 = vld [vmem:[#allocation4 + $0x70] sm:$0xf]
    %v80 = vld [vmem:[#allocation4 + $0x74] sm:$0xf]
    %v81 = vld [vmem:[#allocation4 + $0x78] sm:$0xf]
    %v82 = vld [vmem:[#allocation4 + $0x7c] sm:$0xf]
    %v83 = vld [vmem:[#allocation4 + $0x80] sm:$0xf]
    %v84 = vld [vmem:[#allocation4 + $0x84] sm:$0xf]
    %v85 = vld [vmem:[#allocation4 + $0x88] sm:$0xf]
    %v86 = vld [vmem:[#allocation4 + $0x8c] sm:$0xf]
    %v87 = vld [vmem:[#allocation4 + $0x90] sm:$0xf]
    %v88 = vld [vmem:[#allocation4 + $0x94] sm:$0xf]
    %v89 = vld [vmem:[#allocation4 + $0x98] sm:$0xf]
    %v90 = vld [vmem:[#allocation4 + $0x9c] sm:$0xf]
    %v91 = vld [vmem:[#allocation4 + $0xa0] sm:$0xf]
    %v92 = vld [vmem:[#allocation4 + $0xa4] sm:$0xf]
    %v93 = vld [vmem:[#allocation4 + $0xa8] sm:$0xf]
    %v94 = vld [vmem:[#allocation4 + $0xac] sm:$0xf]
    %v95 = vld [vmem:[#allocation4 + $0xb0] sm:$0xf]
    %v96 = vld [vmem:[#allocation4 + $0xb4] sm:$0xf]
    %v97 = vld [vmem:[#allocation4 + $0xb8] sm:$0xf]
    %v98 = vld [vmem:[#allocation4 + $0xbc] sm:$0xf]
    %v99 = vld [vmem:[#allocation4 + $0xc0] sm:$0xf]
    %v100 = vld [vmem:[#allocation4 + $0xc4] sm:$0xf]
    %v101 = vld [vmem:[#allocation4 + $0xc8] sm:$0xf]
    %v102 = vld [vmem:[#allocation4 + $0xcc] sm:$0xf]
    %v103 = vld [vmem:[#allocation4 + $0xd0] sm:$0xf]
    %v104 = vld [vmem:[#allocation4 + $0xd4] sm:$0xf]
    %v105 = vld [vmem:[#allocation4 + $0xd8] sm:$0xf]
    %v106 = vld [vmem:[#allocation4 + $0xdc] sm:$0xf]
    %v107 = vld [vmem:[#allocation4 + $0xe0] sm:$0xf]
    %v108 = vld [vmem:[#allocation4 + $0xe4] sm:$0xf]
    %v109 = vld [vmem:[#allocation4 + $0xe8] sm:$0xf]
    %v110 = vld [vmem:[#allocation4 + $0xec] sm:$0xf]
    %v111 = vld [vmem:[#allocation4 + $0xf0] sm:$0xf]
    %v112 = vld [vmem:[#allocation4 + $0xf4] sm:$0xf]
    %v113 = vld [vmem:[#allocation4 + $0xf8] sm:$0xf]
    %v114 = vld [vmem:[#allocation4 + $0xfc] sm:$0xf]
    %v115 = vld [vmem:[%s2] sm:$0x1]
    %v117 = vlaneseq
    %v118 = vshrl.u32 %v117, 7
    %v119 = vsub.s32 0, %v118
    %v120 = vrot.slane %v115, %v119
    %v124 = vunpack.c.l.b16 %v49
    %v125 = vunpack.c.h.b16 %v49
    %v126 = vunpack.c.l.b16 %v50
    %v127 = vunpack.c.h.b16 %v50
    %v128 = vpack.c.b16 %v124, %v124
    %v129 = vpack.c.b16 %v125, %v125
    %v130 = vpack.c.b16 %v126, %v126
    %v131 = vpack.c.b16 %v127, %v127
    %v200 = vunpack.c.l.b16 %v51
    %v201 = vunpack.c.l.b16 %v52
    %v202 = vunpack.c.l.b16 %v53
    %v203 = vunpack.c.l.b16 %v54
    %v204 = vunpack.c.l.b16 %v55
    %v205 = vunpack.c.l.b16 %v56
    %v206 = vunpack.c.l.b16 %v57
    %v207 = vunpack.c.l.b16 %v58
    %v208 = vunpack.c.l.b16 %v59
    %v209 = vunpack.c.l.b16 %v60
    %v210 = vunpack.c.l.b16 %v61
    %v211 = vunpack.c.l.b16 %v62
    %v212 = vunpack.c.l.b16 %v63
    %v213 = vunpack.c.l.b16 %v64
    %v214 = vunpack.c.l.b16 %v65
    %v215 = vunpack.c.l.b16 %v66
    %v216 = vunpack.c.l.b16 %v67
    %v217 = vunpack.c.l.b16 %v68
    %v218 = vunpack.c.l.b16 %v69
    %v219 = vunpack.c.l.b16 %v70
    %v220 = vunpack.c.l.b16 %v71
    %v221 = vunpack.c.l.b16 %v72
    %v222 = vunpack.c.l.b16 %v73
    %v223 = vunpack.c.l.b16 %v74
    %v224 = vunpack.c.l.b16 %v75
    %v225 = vunpack.c.l.b16 %v76
    %v226 = vunpack.c.l.b16 %v77
    %v227 = vunpack.c.l.b16 %v78
    %v228 = vunpack.c.l.b16 %v79
    %v229 = vunpack.c.l.b16 %v80
    %v230 = vunpack.c.l.b16 %v81
    %v231 = vunpack.c.l.b16 %v82
    %v232 = vunpack.c.l.b16 %v83
    %v233 = vunpack.c.l.b16 %v84
    %v234 = vunpack.c.l.b16 %v85
    %v235 = vunpack.c.l.b16 %v86
    %v236 = vunpack.c.l.b16 %v87
    %v237 = vunpack.c.l.b16 %v88
    %v238 = vunpack.c.l.b16 %v89
    %v239 = vunpack.c.l.b16 %v90
    %v240 = vunpack.c.l.b16 %v91
    %v241 = vunpack.c.l.b16 %v92
    %v242 = vunpack.c.l.b16 %v93
    %v243 = vunpack.c.l.b16 %v94
    %v244 = vunpack.c.l.b16 %v95
    %v245 = vunpack.c.l.b16 %v96
    %v246 = vunpack.c.l.b16 %v97
    %v247 = vunpack.c.l.b16 %v98
    %v248 = vunpack.c.l.b16 %v99
    %v249 = vunpack.c.l.b16 %v100
    %v250 = vunpack.c.l.b16 %v101
    %v251 = vunpack.c.l.b16 %v102
    %v252 = vunpack.c.l.b16 %v103
    %v253 = vunpack.c.l.b16 %v104
    %v254 = vunpack.c.l.b16 %v105
    %v255 = vunpack.c.l.b16 %v106
    %v256 = vunpack.c.l.b16 %v107
    %v257 = vunpack.c.l.b16 %v108
    %v258 = vunpack.c.l.b16 %v109
    %v259 = vunpack.c.l.b16 %v110
    %v260 = vunpack.c.l.b16 %v111
    %v261 = vunpack.c.l.b16 %v112
    %v262 = vunpack.c.l.b16 %v113
    %v263 = vunpack.c.l.b16 %v114
    %v264 = vpack.c.b16 %v201, %v200
    %v265 = vpack.c.b16 %v203, %v202
    %v266 = vpack.c.b16 %v205, %v204
    %v267 = vpack.c.b16 %v207, %v206
    %v268 = vpack.c.b16 %v209, %v208
    %v269 = vpack.c.b16 %v211, %v210
    %v270 = vpack.c.b16 %v213, %v212
    %v271 = vpack.c.b16 %v215, %v214
    %v272 = vpack.c.b16 %v217, %v216
    %v273 = vpack.c.b16 %v219, %v218
    %v274 = vpack.c.b16 %v221, %v220
    %v275 = vpack.c.b16 %v223, %v222
    %v276 = vpack.c.b16 %v225, %v224
    %v277 = vpack.c.b16 %v227, %v226
    %v278 = vpack.c.b16 %v229, %v228
    %v279 = vpack.c.b16 %v231, %v230
    %v280 = vpack.c.b16 %v233, %v232
    %v281 = vpack.c.b16 %v235, %v234
    %v282 = vpack.c.b16 %v237, %v236
    %v283 = vpack.c.b16 %v239, %v238
    %v284 = vpack.c.b16 %v241, %v240
    %v285 = vpack.c.b16 %v243, %v242
    %v286 = vpack.c.b16 %v245, %v244
    %v287 = vpack.c.b16 %v247, %v246
    %v288 = vpack.c.b16 %v249, %v248
    %v289 = vpack.c.b16 %v251, %v250
    %v290 = vpack.c.b16 %v253, %v252
    %v291 = vpack.c.b16 %v255, %v254
    %v292 = vpack.c.b16 %v257, %v256
    %v293 = vpack.c.b16 %v259, %v258
    %v294 = vpack.c.b16 %v261, %v260
    %v295 = vpack.c.b16 %v263, %v262
    %328 = vmatprep.subr.bf16.mxu0 0
    %329 = vmatpush1.bf16.msra.mxu0 %v264
    %330 = vmatprep.subr.bf16.mxu0 0
    %331 = vmatpush1.bf16.msra.mxu0 %v265
    %332 = vmatprep.subr.bf16.mxu0 0
    %333 = vmatpush1.bf16.msra.mxu0 %v266
    %334 = vmatprep.subr.bf16.mxu0 0
    %335 = vmatpush1.bf16.msra.mxu0 %v267
    %336 = vmatprep.subr.bf16.mxu0 0
    %337 = vmatpush1.bf16.msra.mxu0 %v268
    %338 = vmatprep.subr.bf16.mxu0 0
    %339 = vmatpush1.bf16.msra.mxu0 %v269
    %340 = vmatprep.subr.bf16.mxu0 0
    %341 = vmatpush1.bf16.msra.mxu0 %v270
    %342 = vmatprep.subr.bf16.mxu0 0
    %343 = vmatpush1.bf16.msra.mxu0 %v271
    %344 = vmatprep.subr.bf16.mxu0 0
    %345 = vmatpush1.bf16.msra.mxu0 %v272
    %346 = vmatprep.subr.bf16.mxu0 0
    %347 = vmatpush1.bf16.msra.mxu0 %v273
    %348 = vmatprep.subr.bf16.mxu0 0
    %349 = vmatpush1.bf16.msra.mxu0 %v274
    %350 = vmatprep.subr.bf16.mxu0 0
    %351 = vmatpush1.bf16.msra.mxu0 %v275
    %352 = vmatprep.subr.bf16.mxu0 0
    %353 = vmatpush1.bf16.msra.mxu0 %v276
    %354 = vmatprep.subr.bf16.mxu0 0
    %355 = vmatpush1.bf16.msra.mxu0 %v277
    %356 = vmatprep.subr.bf16.mxu0 0
    %357 = vmatpush1.bf16.msra.mxu0 %v278
    %358 = vmatprep.subr.bf16.mxu0 0
    %359 = vmatpush1.bf16.msra.mxu0 %v279
    %360 = vmatprep.mubr.bf16.mxu0 %v129
    %361 = vmatmul.mubr.bf16.gmra.mrb[0].mxu0 %v128
    %v362 = vpop.f32.mrb[0].mxu0
    %v363 = vadd.f32 %v120, %v362
    %v364 = vpop.f32.mrb[0].mxu0
    %v365 = vpop.f32.mrb[0].mxu0
    %v366 = vpop.f32.mrb[0].mxu0
    %367 = vdwg.mxu0
    %368 = vmatprep.subr.bf16.mxu0 0
    %369 = vmatpush1.bf16.msra.mxu0 %v280
    %370 = vmatprep.subr.bf16.mxu0 0
    %371 = vmatpush1.bf16.msra.mxu0 %v281
    %372 = vmatprep.subr.bf16.mxu0 0
    %373 = vmatpush1.bf16.msra.mxu0 %v282
    %374 = vmatprep.subr.bf16.mxu0 0
    %375 = vmatpush1.bf16.msra.mxu0 %v283
    %376 = vmatprep.subr.bf16.mxu0 0
    %377 = vmatpush1.bf16.msra.mxu0 %v284
    %378 = vmatprep.subr.bf16.mxu0 0
    %379 = vmatpush1.bf16.msra.mxu0 %v285
    %380 = vmatprep.subr.bf16.mxu0 0
    %381 = vmatpush1.bf16.msra.mxu0 %v286
    %382 = vmatprep.subr.bf16.mxu0 0
    %383 = vmatpush1.bf16.msra.mxu0 %v287
    %384 = vmatprep.subr.bf16.mxu0 0
    %385 = vmatpush1.bf16.msra.mxu0 %v288
    %386 = vmatprep.subr.bf16.mxu0 0
    %387 = vmatpush1.bf16.msra.mxu0 %v289
    %388 = vmatprep.subr.bf16.mxu0 0
    %389 = vmatpush1.bf16.msra.mxu0 %v290
    %390 = vmatprep.subr.bf16.mxu0 0
    %391 = vmatpush1.bf16.msra.mxu0 %v291
    %392 = vmatprep.subr.bf16.mxu0 0
    %393 = vmatpush1.bf16.msra.mxu0 %v292
    %394 = vmatprep.subr.bf16.mxu0 0
    %395 = vmatpush1.bf16.msra.mxu0 %v293
    %396 = vmatprep.subr.bf16.mxu0 0
    %397 = vmatpush1.bf16.msra.mxu0 %v294
    %398 = vmatprep.subr.bf16.mxu0 0
    %399 = vmatpush1.bf16.msra.mxu0 %v295
    %400 = vmatprep.mubr.bf16.mxu0 %v131
    %401 = vmatmul.mubr.bf16.gmra.mrb[0].mxu0 %v130
    %v402 = vpop.f32.mrb[0].mxu0
    %v403 = vadd.f32 %v363, %v402
    %v404 = vpop.f32.mrb[0].mxu0
    %v405 = vpop.f32.mrb[0].mxu0
    %v406 = vpop.f32.mrb[0].mxu0
    %407 = vdwg.mxu0
    %v408 = vmax.f32 %v403, 0.0
    %v409 = vld [vmem:[%s3] sm:$0x7]
    %v410 = vld [vmem:[%s4] sm:$0x1]
    %v411 = vlaneseq
    %v412 = vshrl.u32 %v411, 7
    %v413 = vsub.s32 0, %v412
    %v414 = vrot.slane %v409, %v413
    %v415 = vmul.f32 %v408, %v414
    %416 = vadd.xlane.f32.xlu0 %v415
    %v417 = vpop.xlane.xlu0 %416
    %v419 = vlaneseq
    %v420 = vshrl.u32 %v419, 7
    %v421 = vsub.s32 0, %v420
    %v422 = vrot.slane %v410, %v421
    %v424 = vadd.f32 %v417, %v422
    %v425 = vlaneseq
    %v426 = vshrl.u32 %v425, 7
    %v427 = vsub.s32 1, %v426
    %v428 = vrot.slane %v409, %v427
    %v429 = vmul.f32 %v408, %v428
    %430 = vadd.xlane.f32.xlu0 %v429
    %v431 = vpop.xlane.xlu0 %430
    %v432 = vadd.f32 %v431, %v422
    %v433 = vlaneseq
    %v434 = vshrl.u32 %v433, 7
    %v435 = vsub.s32 2, %v434
    %v436 = vrot.slane %v409, %v435
    %v437 = vmul.f32 %v408, %v436
    %438 = vadd.xlane.f32.xlu0 %v437
    %v439 = vpop.xlane.xlu0 %438
    %v440 = vadd.f32 %v439, %v422
    %442 = vrot.lane.b32.xlu0 %v432, 127
    %v443 = vpop.permute.xlu0 %442
    %v445 = vmax.f32 %v424, %v443
    %v446 = vsub.f32 %v424, %v445
    %v447 = vmul.f32 %v446, 1.442695
    %v448 = vpow.pop %v447
    %450 = vrot.lane.b32.xlu0 %v445, 1
    %v451 = vpop.permute.xlu0 %450
    %v453 = vsub.f32 %v432, %v451
    %v454 = vmul.f32 %v453, 1.442695
    %v455 = vpow.pop %v454
    %457 = vrot.lane.b32.xlu0 %v455, 127
    %v458 = vpop.permute.xlu0 %457
    %v460 = vadd.f32 %v448, %v458
    %v461 = vrcp.pop %v460
    %v462 = vmul.f32 1.0, %v461
    %v463 = vmul.f32 %v448, %v462
    %465 = vrot.lane.b32.xlu0 %v462, 1
    %v466 = vpop.permute.xlu0 %465
    %v468 = vmul.f32 %v455, %v466
    %vm469 = vcmask 7168
    %v470 = vsel %vm469, %v463, %v468
    %vm471 = vcmask 15360
    %472 = vst.msk [vmem:[%s5] sm:$0xff] %vm471, %v470
    %474 = vrot.lane.b32.xlu0 %v440, 126
    %v475 = vpop.permute.xlu0 %474
    %477 = vst.msk [vmem:[%s6] sm:$0xff] %vm469, %v475
    // Predicated region
    $region30: #{tpu_custom_call.1} parent=1 // pred_check
      _
    $region31: #{tpu_custom_call.1} parent=1 // pred_check_branch
      %479 = sbr.rel (0) target = $region33
    $region32: #{tpu_custom_call.1} parent=1 // pred_region
      _
    $region33: #{tpu_custom_call.1} parent=1 // pred_fallthru
      _
    // Predicated region
    $region34: #{tpu_custom_call.1} parent=1 // pred_check
      _
    $region35: #{tpu_custom_call.1} parent=1 // pred_check_branch
      %481 = sbr.rel (0) target = $region37
    $region36: #{tpu_custom_call.1} parent=1 // pred_region
      _
    $region37: #{tpu_custom_call.1} parent=1 // pred_fallthru
      _
    // Predicated region
    $region38: #{tpu_custom_call.1} parent=1 // pred_check
      _
    $region39: #{tpu_custom_call.1} parent=1 // pred_check_branch
      %483 = sbr.rel (0) target = $region41
    $region40: #{tpu_custom_call.1} parent=1 // pred_region
      _
    $region41: #{tpu_custom_call.1} parent=1 // pred_fallthru
      _
    // Predicated region
    $region42: #{tpu_custom_call.1} parent=1 // pred_check
      _
    $region43: #{tpu_custom_call.1} parent=1 // pred_check_branch
      %485 = sbr.rel (0) target = $region45
    $region44: #{tpu_custom_call.1} parent=1 // pred_region
      _
    $region45: #{tpu_custom_call.1} parent=1 // pred_fallthru
      _
    %486 = vsyncpa [#allocation3], 1
    %487 = vsyncpa [#allocation5], 1

</llo_original>
